<compile_context>
chip_gen: v7x
topology: tpu7x:2x2x1
jax: 0.10.0
libtpu: 0.0.40
codegen_flags: <defaults>
</compile_context>

<pallas_src>
import jax
import jax.numpy as jnp
from jax.experimental import pallas as pl
from jax.experimental.pallas import tpu as pltpu


_SENTINEL = float(jnp.finfo(jnp.float32).min)   # finite "minus infinity"


def _make_convex_accumulator_kernel(n_in, n_pad):
    """Kernel factory.  n_in: lane width of the incoming block (multiple of
    128); n_pad: power-of-two lane width of the sorting network (>= n_in)."""
    pad_cols = n_pad - n_in

    def kernel(x_ref, w_ref, o_ref):
        x = x_ref[...].astype(jnp.float32)        # (TB, n_in)
        w = w_ref[...]                            # (TB, 1) softmax weights (0 on pad rows)
        tb = x.shape[0]

        if pad_cols:
            # Lane-aligned sentinel slab appended in-kernel (n_in % 128 == 0),
            # avoids an extra HBM pass over x in the wrapper.
            x = jnp.concatenate(
                [x, jnp.full((tb, pad_cols), _SENTINEL, jnp.float32)], axis=1)
        n = n_pad

        lane = jax.lax.broadcasted_iota(jnp.int32, (tb, n), 1)

        # ---- bitonic sorting network, descending along the lane axis -------
        # pltpu.roll uses the jnp.roll convention: out[i] = in[(i - shift) % n].
        # Partner of lane i at distance j is x[i ^ j]:
        #   low half  ((i & j) == 0): partner at i + j  -> roll(x, n - j)
        #   high half                : partner at i - j  -> roll(x, j)
        # Rolls land on the XLU slot; min/max/select on the VPU; masks are
        # recomputed per stage so only `lane` stays resident.
        k = 2
        while k <= n:
            # Per-block sort direction for this k-stage (all-descending when
            # k == n, i.e. (lane & n) == 0 for every lane).
            kbit = None if k == n else ((lane & k) != 0)
            j = k // 2
            while j >= 1:
                low = (lane & j) == 0
                r_fwd = pltpu.roll(x, n - j, axis=1)      # x[(i + j) % n]
                r_bwd = pltpu.roll(x, j, axis=1)          # x[(i - j) % n]
                p = jnp.where(low, r_fwd, r_bwd)
                # take_max <=> (lane&k)==0 is equal to (lane&j)==0; expressed
                # as "differ -> min, same -> max" to skip the logical-not.
                if kbit is None:
                    x = jnp.where(low, jnp.maximum(x, p), jnp.minimum(x, p))
                else:
                    differ = jnp.logical_xor(kbit, jnp.logical_not(low))
                    x = jnp.where(differ, jnp.maximum(x, p), jnp.minimum(x, p))
                j //= 2
            k *= 2

        # ---- convex combination across the batch rows of this block --------
        # (1,TB)@(TB,n) is ~0% MXU utilization; broadcast-multiply (VPU) plus
        # a sublane reduction (XLU) keeps the MXU FIFO latency off the path.
        partial = jnp.sum(w * x, axis=0, keepdims=True)   # (1, n_pad)
        o_ref[...] = partial[None]                        # (1, 1, n_pad)

    return kernel


def convex_accumulator(x, weight, *, block_rows=None, interpret=False):
    """Forward of ConvexAccumulator (normalization='softmax', eval mode).

    x: (B, N) float, weight: (1, B) float (nn.Linear(batch_size, 1).weight).
    Returns (1, N) f32 = softmax(weight, dim=1) @ sort(x, dim=-1, descending).
    Assumes finite inputs (no -inf / NaN).
    """
    B, N = x.shape
    assert weight.shape == (1, B)

    # softmax over the FULL batch dim (cannot be done per batch block).
    w_sm = jax.nn.softmax(weight.astype(jnp.float32), axis=1)       # (1, B)

    # Lane extent of the bitonic network: power of two >= 128.
    n_pad = max(128, pl.next_power_of_2(N))

    # ---- lane (feature) padding -------------------------------------------
    if N % 128 == 0:
        # Lane-aligned: feed x directly; any power-of-two top-up slab is
        # appended in-kernel (no extra HBM pass over x).
        x_in = x.astype(jnp.float32)
        n_in = N
    else:
        # Misaligned N: pad once in the wrapper (one XLA pad pass).
        x_in = jnp.full((B, n_pad), _SENTINEL, jnp.float32).at[:, :N].set(
            x.astype(jnp.float32))
        n_in = n_pad

    # ---- batch (sublane) tiling -------------------------------------------
    b8 = pl.cdiv(B, 8) * 8
    if block_rows is None:
        # Largest multiple-of-8 divisor of the padded batch, capped at 128 and
        # at b8//2 when possible so the "parallel" grid has >= 2 blocks
        # (both TensorCores on v7x); amortizes the ~0.35us per-step overhead.
        cap = min(128, b8 if b8 < 16 else b8 // 2)
        block_rows = max(br for br in range(8, cap + 1, 8) if b8 % br == 0)
        b_pad = b8
    else:
        assert block_rows % 8 == 0
        b_pad = pl.cdiv(B, block_rows) * block_rows
    num_blocks = b_pad // block_rows

    # Weight column: padded batch rows get weight 0 (tiny array, always built).
    w_col = jnp.zeros((b_pad, 1), jnp.float32).at[:B, 0].set(w_sm[0])
    if b_pad != B:
        # Only the small batch remainder is padded; pad rows are finite zeros
        # so 0-weight * value stays finite.
        x_in = jnp.concatenate(
            [x_in, jnp.zeros((b_pad - B, n_in), jnp.float32)], axis=0)

    kernel = _make_convex_accumulator_kernel(n_in, n_pad)

    # Per-step VMEM: (block_rows * (n_in + n_pad) + n_pad) * 4 B plus the
    # double-buffered input tiles — low MiB at most, far under v5e/v6e/v7x
    # limits.
    partials = pl.pallas_call(
        kernel,
        out_shape=jax.ShapeDtypeStruct((num_blocks, 1, n_pad), jnp.float32),
        grid=(num_blocks,),
        in_specs=[
            pl.BlockSpec((block_rows, n_in), lambda i: (i, 0)),
            pl.BlockSpec((block_rows, 1), lambda i: (i, 0)),
        ],
        out_specs=pl.BlockSpec((1, 1, n_pad), lambda i: (i, 0, 0)),
        compiler_params=pltpu.CompilerParams(
            # Each grid step sorts its own rows and writes its own partial row
            # -> truly parallel (shards across both TCs on v7x).
            dimension_semantics=("parallel",),
        ),
        interpret=interpret,
    )(x_in, w_col)

    # Tiny combine over the (few) batch blocks in XLA so the grid axis can
    # stay "parallel" instead of becoming a serial in-kernel accumulator.
    out = jnp.sum(partials, axis=0)                   # (1, n_pad)
    return out[:, :N]


if __name__ == "__main__":
    # batch_size = 8 (the nn.Linear in_features), feature dim N = 128
    B, N = 8, 128
    key = jax.random.PRNGKey(0)
    kx, kw = jax.random.split(key)
    x = jax.random.normal(kx, (B, N), dtype=jnp.float32)
    # deterministic stand-in for nn.Linear(batch_size, 1).weight -> shape (1, B)
    # (bias is unused on the softmax path)
    weight = jax.random.normal(kw, (1, B), dtype=jnp.float32) * 0.1

    out = convex_accumulator(x, weight)
    out = jax.block_until_ready(out)

    # pure-JAX reference of the PyTorch forward (softmax normalization)
    x_sorted_ref = -jnp.sort(-x, axis=-1)
    ref = jax.nn.softmax(weight, axis=1) @ x_sorted_ref
    assert out.shape == (1, N)
    assert jnp.allclose(out, ref, atol=1e-5, rtol=1e-5), "mismatch vs reference"

    print("KERNEL_OK")
</pallas_src>

<mosaic_0001>
module attributes {stable_mosaic.version = 11 : i64} {
  func.func @kernel(%arg0: i32, %arg1: memref<8x128xf32, #tpu.memory_space<vmem>>, %arg2: memref<8x1xf32, #tpu.memory_space<vmem>>, %arg3: memref<1x1x128xf32, #tpu.memory_space<vmem>>) attributes {dimension_semantics = [#tpu.dimension_semantics<parallel>], iteration_bounds = array<i64: 1>, scalar_prefetch = 0 : i64, scratch_operands = 0 : i64, tpu.core_type = #tpu.core_type<tc>, window_params = [{transform_indices = @transform_0, window_bounds = array<i64: 8, 128>}, {transform_indices = @transform_1, window_bounds = array<i64: 8, 1>}, {transform_indices = @transform_2, window_bounds = array<i64: 1, 1, 128>}]} {
    %c0 = arith.constant 0 : index
    %c0_0 = arith.constant 0 : index
    %0 = vector.load %arg1[%c0, %c0_0] : memref<8x128xf32, #tpu.memory_space<vmem>>, vector<8x128xf32>
    %c0_1 = arith.constant 0 : index
    %c0_2 = arith.constant 0 : index
    %1 = vector.load %arg2[%c0_1, %c0_2] : memref<8x1xf32, #tpu.memory_space<vmem>>, vector<8x1xf32>
    %2 = tpu.iota {dimensions = array<i32: 1>} : vector<8x128xi32>
    %c2_i32 = arith.constant 2 : i32
    %3 = vector.broadcast %c2_i32 : i32 to vector<8x128xi32>
    %4 = arith.andi %2, %3 : vector<8x128xi32>
    %c0_i32 = arith.constant 0 : i32
    %5 = vector.broadcast %c0_i32 : i32 to vector<8x128xi32>
    %6 = arith.cmpi ne, %4, %5 : vector<8x128xi32>
    %c1_i32 = arith.constant 1 : i32
    %7 = vector.broadcast %c1_i32 : i32 to vector<8x128xi32>
    %8 = arith.andi %2, %7 : vector<8x128xi32>
    %c0_i32_3 = arith.constant 0 : i32
    %9 = vector.broadcast %c0_i32_3 : i32 to vector<8x128xi32>
    %10 = arith.cmpi eq, %8, %9 : vector<8x128xi32>
    %c127_i32 = arith.constant 127 : i32
    %11 = tpu.dynamic_rotate %0 by %c127_i32 dim 1 : vector<8x128xf32>, i32 -> vector<8x128xf32>
    %c1_i32_4 = arith.constant 1 : i32
    %12 = tpu.dynamic_rotate %0 by %c1_i32_4 dim 1 : vector<8x128xf32>, i32 -> vector<8x128xf32>
    %13 = arith.select %10, %11, %12 : vector<8x128xi1>, vector<8x128xf32>
    %cst = arith.constant dense<true> : vector<8x128xi1>
    %14 = arith.xori %10, %cst : vector<8x128xi1>
    %15 = arith.xori %6, %14 : vector<8x128xi1>
    %16 = arith.maximumf %0, %13 : vector<8x128xf32>
    %17 = arith.minimumf %0, %13 : vector<8x128xf32>
    %18 = arith.select %15, %16, %17 : vector<8x128xi1>, vector<8x128xf32>
    %c4_i32 = arith.constant 4 : i32
    %19 = vector.broadcast %c4_i32 : i32 to vector<8x128xi32>
    %20 = arith.andi %2, %19 : vector<8x128xi32>
    %c0_i32_5 = arith.constant 0 : i32
    %21 = vector.broadcast %c0_i32_5 : i32 to vector<8x128xi32>
    %22 = arith.cmpi ne, %20, %21 : vector<8x128xi32>
    %c2_i32_6 = arith.constant 2 : i32
    %23 = vector.broadcast %c2_i32_6 : i32 to vector<8x128xi32>
    %24 = arith.andi %2, %23 : vector<8x128xi32>
    %c0_i32_7 = arith.constant 0 : i32
    %25 = vector.broadcast %c0_i32_7 : i32 to vector<8x128xi32>
    %26 = arith.cmpi eq, %24, %25 : vector<8x128xi32>
    %c126_i32 = arith.constant 126 : i32
    %27 = tpu.dynamic_rotate %18 by %c126_i32 dim 1 : vector<8x128xf32>, i32 -> vector<8x128xf32>
    %c2_i32_8 = arith.constant 2 : i32
    %28 = tpu.dynamic_rotate %18 by %c2_i32_8 dim 1 : vector<8x128xf32>, i32 -> vector<8x128xf32>
    %29 = arith.select %26, %27, %28 : vector<8x128xi1>, vector<8x128xf32>
    %cst_9 = arith.constant dense<true> : vector<8x128xi1>
    %30 = arith.xori %26, %cst_9 : vector<8x128xi1>
    %31 = arith.xori %22, %30 : vector<8x128xi1>
    %32 = arith.maximumf %18, %29 : vector<8x128xf32>
    %33 = arith.minimumf %18, %29 : vector<8x128xf32>
    %34 = arith.select %31, %32, %33 : vector<8x128xi1>, vector<8x128xf32>
    %c1_i32_10 = arith.constant 1 : i32
    %35 = vector.broadcast %c1_i32_10 : i32 to vector<8x128xi32>
    %36 = arith.andi %2, %35 : vector<8x128xi32>
    %c0_i32_11 = arith.constant 0 : i32
    %37 = vector.broadcast %c0_i32_11 : i32 to vector<8x128xi32>
    %38 = arith.cmpi eq, %36, %37 : vector<8x128xi32>
    %c127_i32_12 = arith.constant 127 : i32
    %39 = tpu.dynamic_rotate %34 by %c127_i32_12 dim 1 : vector<8x128xf32>, i32 -> vector<8x128xf32>
    %c1_i32_13 = arith.constant 1 : i32
    %40 = tpu.dynamic_rotate %34 by %c1_i32_13 dim 1 : vector<8x128xf32>, i32 -> vector<8x128xf32>
    %41 = arith.select %38, %39, %40 : vector<8x128xi1>, vector<8x128xf32>
    %cst_14 = arith.constant dense<true> : vector<8x128xi1>
    %42 = arith.xori %38, %cst_14 : vector<8x128xi1>
    %43 = arith.xori %22, %42 : vector<8x128xi1>
    %44 = arith.maximumf %34, %41 : vector<8x128xf32>
    %45 = arith.minimumf %34, %41 : vector<8x128xf32>
    %46 = arith.select %43, %44, %45 : vector<8x128xi1>, vector<8x128xf32>
    %c8_i32 = arith.constant 8 : i32
    %47 = vector.broadcast %c8_i32 : i32 to vector<8x128xi32>
    %48 = arith.andi %2, %47 : vector<8x128xi32>
    %c0_i32_15 = arith.constant 0 : i32
    %49 = vector.broadcast %c0_i32_15 : i32 to vector<8x128xi32>
    %50 = arith.cmpi ne, %48, %49 : vector<8x128xi32>
    %c4_i32_16 = arith.constant 4 : i32
    %51 = vector.broadcast %c4_i32_16 : i32 to vector<8x128xi32>
    %52 = arith.andi %2, %51 : vector<8x128xi32>
    %c0_i32_17 = arith.constant 0 : i32
    %53 = vector.broadcast %c0_i32_17 : i32 to vector<8x128xi32>
    %54 = arith.cmpi eq, %52, %53 : vector<8x128xi32>
    %c124_i32 = arith.constant 124 : i32
    %55 = tpu.dynamic_rotate %46 by %c124_i32 dim 1 : vector<8x128xf32>, i32 -> vector<8x128xf32>
    %c4_i32_18 = arith.constant 4 : i32
    %56 = tpu.dynamic_rotate %46 by %c4_i32_18 dim 1 : vector<8x128xf32>, i32 -> vector<8x128xf32>
    %57 = arith.select %54, %55, %56 : vector<8x128xi1>, vector<8x128xf32>
    %cst_19 = arith.constant dense<true> : vector<8x128xi1>
    %58 = arith.xori %54, %cst_19 : vector<8x128xi1>
    %59 = arith.xori %50, %58 : vector<8x128xi1>
    %60 = arith.maximumf %46, %57 : vector<8x128xf32>
    %61 = arith.minimumf %46, %57 : vector<8x128xf32>
    %62 = arith.select %59, %60, %61 : vector<8x128xi1>, vector<8x128xf32>
    %c2_i32_20 = arith.constant 2 : i32
    %63 = vector.broadcast %c2_i32_20 : i32 to vector<8x128xi32>
    %64 = arith.andi %2, %63 : vector<8x128xi32>
    %c0_i32_21 = arith.constant 0 : i32
    %65 = vector.broadcast %c0_i32_21 : i32 to vector<8x128xi32>
    %66 = arith.cmpi eq, %64, %65 : vector<8x128xi32>
    %c126_i32_22 = arith.constant 126 : i32
    %67 = tpu.dynamic_rotate %62 by %c126_i32_22 dim 1 : vector<8x128xf32>, i32 -> vector<8x128xf32>
    %c2_i32_23 = arith.constant 2 : i32
    %68 = tpu.dynamic_rotate %62 by %c2_i32_23 dim 1 : vector<8x128xf32>, i32 -> vector<8x128xf32>
    %69 = arith.select %66, %67, %68 : vector<8x128xi1>, vector<8x128xf32>
    %cst_24 = arith.constant dense<true> : vector<8x128xi1>
    %70 = arith.xori %66, %cst_24 : vector<8x128xi1>
    %71 = arith.xori %50, %70 : vector<8x128xi1>
    %72 = arith.maximumf %62, %69 : vector<8x128xf32>
    %73 = arith.minimumf %62, %69 : vector<8x128xf32>
    %74 = arith.select %71, %72, %73 : vector<8x128xi1>, vector<8x128xf32>
    %c1_i32_25 = arith.constant 1 : i32
    %75 = vector.broadcast %c1_i32_25 : i32 to vector<8x128xi32>
    %76 = arith.andi %2, %75 : vector<8x128xi32>
    %c0_i32_26 = arith.constant 0 : i32
    %77 = vector.broadcast %c0_i32_26 : i32 to vector<8x128xi32>
    %78 = arith.cmpi eq, %76, %77 : vector<8x128xi32>
    %c127_i32_27 = arith.constant 127 : i32
    %79 = tpu.dynamic_rotate %74 by %c127_i32_27 dim 1 : vector<8x128xf32>, i32 -> vector<8x128xf32>
    %c1_i32_28 = arith.constant 1 : i32
    %80 = tpu.dynamic_rotate %74 by %c1_i32_28 dim 1 : vector<8x128xf32>, i32 -> vector<8x128xf32>
    %81 = arith.select %78, %79, %80 : vector<8x128xi1>, vector<8x128xf32>
    %cst_29 = arith.constant dense<true> : vector<8x128xi1>
    %82 = arith.xori %78, %cst_29 : vector<8x128xi1>
    %83 = arith.xori %50, %82 : vector<8x128xi1>
    %84 = arith.maximumf %74, %81 : vector<8x128xf32>
    %85 = arith.minimumf %74, %81 : vector<8x128xf32>
    %86 = arith.select %83, %84, %85 : vector<8x128xi1>, vector<8x128xf32>
    %c16_i32 = arith.constant 16 : i32
    %87 = vector.broadcast %c16_i32 : i32 to vector<8x128xi32>
    %88 = arith.andi %2, %87 : vector<8x128xi32>
    %c0_i32_30 = arith.constant 0 : i32
    %89 = vector.broadcast %c0_i32_30 : i32 to vector<8x128xi32>
    %90 = arith.cmpi ne, %88, %89 : vector<8x128xi32>
    %c8_i32_31 = arith.constant 8 : i32
    %91 = vector.broadcast %c8_i32_31 : i32 to vector<8x128xi32>
    %92 = arith.andi %2, %91 : vector<8x128xi32>
    %c0_i32_32 = arith.constant 0 : i32
    %93 = vector.broadcast %c0_i32_32 : i32 to vector<8x128xi32>
    %94 = arith.cmpi eq, %92, %93 : vector<8x128xi32>
    %c120_i32 = arith.constant 120 : i32
    %95 = tpu.dynamic_rotate %86 by %c120_i32 dim 1 : vector<8x128xf32>, i32 -> vector<8x128xf32>
    %c8_i32_33 = arith.constant 8 : i32
    %96 = tpu.dynamic_rotate %86 by %c8_i32_33 dim 1 : vector<8x128xf32>, i32 -> vector<8x128xf32>
    %97 = arith.select %94, %95, %96 : vector<8x128xi1>, vector<8x128xf32>
    %cst_34 = arith.constant dense<true> : vector<8x128xi1>
    %98 = arith.xori %94, %cst_34 : vector<8x128xi1>
    %99 = arith.xori %90, %98 : vector<8x128xi1>
    %100 = arith.maximumf %86, %97 : vector<8x128xf32>
    %101 = arith.minimumf %86, %97 : vector<8x128xf32>
    %102 = arith.select %99, %100, %101 : vector<8x128xi1>, vector<8x128xf32>
    %c4_i32_35 = arith.constant 4 : i32
    %103 = vector.broadcast %c4_i32_35 : i32 to vector<8x128xi32>
    %104 = arith.andi %2, %103 : vector<8x128xi32>
    %c0_i32_36 = arith.constant 0 : i32
    %105 = vector.broadcast %c0_i32_36 : i32 to vector<8x128xi32>
    %106 = arith.cmpi eq, %104, %105 : vector<8x128xi32>
    %c124_i32_37 = arith.constant 124 : i32
    %107 = tpu.dynamic_rotate %102 by %c124_i32_37 dim 1 : vector<8x128xf32>, i32 -> vector<8x128xf32>
    %c4_i32_38 = arith.constant 4 : i32
    %108 = tpu.dynamic_rotate %102 by %c4_i32_38 dim 1 : vector<8x128xf32>, i32 -> vector<8x128xf32>
    %109 = arith.select %106, %107, %108 : vector<8x128xi1>, vector<8x128xf32>
    %cst_39 = arith.constant dense<true> : vector<8x128xi1>
    %110 = arith.xori %106, %cst_39 : vector<8x128xi1>
    %111 = arith.xori %90, %110 : vector<8x128xi1>
    %112 = arith.maximumf %102, %109 : vector<8x128xf32>
    %113 = arith.minimumf %102, %109 : vector<8x128xf32>
    %114 = arith.select %111, %112, %113 : vector<8x128xi1>, vector<8x128xf32>
    %c2_i32_40 = arith.constant 2 : i32
    %115 = vector.broadcast %c2_i32_40 : i32 to vector<8x128xi32>
    %116 = arith.andi %2, %115 : vector<8x128xi32>
    %c0_i32_41 = arith.constant 0 : i32
    %117 = vector.broadcast %c0_i32_41 : i32 to vector<8x128xi32>
    %118 = arith.cmpi eq, %116, %117 : vector<8x128xi32>
    %c126_i32_42 = arith.constant 126 : i32
    %119 = tpu.dynamic_rotate %114 by %c126_i32_42 dim 1 : vector<8x128xf32>, i32 -> vector<8x128xf32>
    %c2_i32_43 = arith.constant 2 : i32
    %120 = tpu.dynamic_rotate %114 by %c2_i32_43 dim 1 : vector<8x128xf32>, i32 -> vector<8x128xf32>
    %121 = arith.select %118, %119, %120 : vector<8x128xi1>, vector<8x128xf32>
    %cst_44 = arith.constant dense<true> : vector<8x128xi1>
    %122 = arith.xori %118, %cst_44 : vector<8x128xi1>
    %123 = arith.xori %90, %122 : vector<8x128xi1>
    %124 = arith.maximumf %114, %121 : vector<8x128xf32>
    %125 = arith.minimumf %114, %121 : vector<8x128xf32>
    %126 = arith.select %123, %124, %125 : vector<8x128xi1>, vector<8x128xf32>
    %c1_i32_45 = arith.constant 1 : i32
    %127 = vector.broadcast %c1_i32_45 : i32 to vector<8x128xi32>
    %128 = arith.andi %2, %127 : vector<8x128xi32>
    %c0_i32_46 = arith.constant 0 : i32
    %129 = vector.broadcast %c0_i32_46 : i32 to vector<8x128xi32>
    %130 = arith.cmpi eq, %128, %129 : vector<8x128xi32>
    %c127_i32_47 = arith.constant 127 : i32
    %131 = tpu.dynamic_rotate %126 by %c127_i32_47 dim 1 : vector<8x128xf32>, i32 -> vector<8x128xf32>
    %c1_i32_48 = arith.constant 1 : i32
    %132 = tpu.dynamic_rotate %126 by %c1_i32_48 dim 1 : vector<8x128xf32>, i32 -> vector<8x128xf32>
    %133 = arith.select %130, %131, %132 : vector<8x128xi1>, vector<8x128xf32>
    %cst_49 = arith.constant dense<true> : vector<8x128xi1>
    %134 = arith.xori %130, %cst_49 : vector<8x128xi1>
    %135 = arith.xori %90, %134 : vector<8x128xi1>
    %136 = arith.maximumf %126, %133 : vector<8x128xf32>
    %137 = arith.minimumf %126, %133 : vector<8x128xf32>
    %138 = arith.select %135, %136, %137 : vector<8x128xi1>, vector<8x128xf32>
    %c32_i32 = arith.constant 32 : i32
    %139 = vector.broadcast %c32_i32 : i32 to vector<8x128xi32>
    %140 = arith.andi %2, %139 : vector<8x128xi32>
    %c0_i32_50 = arith.constant 0 : i32
    %141 = vector.broadcast %c0_i32_50 : i32 to vector<8x128xi32>
    %142 = arith.cmpi ne, %140, %141 : vector<8x128xi32>
    %c16_i32_51 = arith.constant 16 : i32
    %143 = vector.broadcast %c16_i32_51 : i32 to vector<8x128xi32>
    %144 = arith.andi %2, %143 : vector<8x128xi32>
    %c0_i32_52 = arith.constant 0 : i32
    %145 = vector.broadcast %c0_i32_52 : i32 to vector<8x128xi32>
    %146 = arith.cmpi eq, %144, %145 : vector<8x128xi32>
    %c112_i32 = arith.constant 112 : i32
    %147 = tpu.dynamic_rotate %138 by %c112_i32 dim 1 : vector<8x128xf32>, i32 -> vector<8x128xf32>
    %c16_i32_53 = arith.constant 16 : i32
    %148 = tpu.dynamic_rotate %138 by %c16_i32_53 dim 1 : vector<8x128xf32>, i32 -> vector<8x128xf32>
    %149 = arith.select %146, %147, %148 : vector<8x128xi1>, vector<8x128xf32>
    %cst_54 = arith.constant dense<true> : vector<8x128xi1>
    %150 = arith.xori %146, %cst_54 : vector<8x128xi1>
    %151 = arith.xori %142, %150 : vector<8x128xi1>
    %152 = arith.maximumf %138, %149 : vector<8x128xf32>
    %153 = arith.minimumf %138, %149 : vector<8x128xf32>
    %154 = arith.select %151, %152, %153 : vector<8x128xi1>, vector<8x128xf32>
    %c8_i32_55 = arith.constant 8 : i32
    %155 = vector.broadcast %c8_i32_55 : i32 to vector<8x128xi32>
    %156 = arith.andi %2, %155 : vector<8x128xi32>
    %c0_i32_56 = arith.constant 0 : i32
    %157 = vector.broadcast %c0_i32_56 : i32 to vector<8x128xi32>
    %158 = arith.cmpi eq, %156, %157 : vector<8x128xi32>
    %c120_i32_57 = arith.constant 120 : i32
    %159 = tpu.dynamic_rotate %154 by %c120_i32_57 dim 1 : vector<8x128xf32>, i32 -> vector<8x128xf32>
    %c8_i32_58 = arith.constant 8 : i32
    %160 = tpu.dynamic_rotate %154 by %c8_i32_58 dim 1 : vector<8x128xf32>, i32 -> vector<8x128xf32>
    %161 = arith.select %158, %159, %160 : vector<8x128xi1>, vector<8x128xf32>
    %cst_59 = arith.constant dense<true> : vector<8x128xi1>
    %162 = arith.xori %158, %cst_59 : vector<8x128xi1>
    %163 = arith.xori %142, %162 : vector<8x128xi1>
    %164 = arith.maximumf %154, %161 : vector<8x128xf32>
    %165 = arith.minimumf %154, %161 : vector<8x128xf32>
    %166 = arith.select %163, %164, %165 : vector<8x128xi1>, vector<8x128xf32>
    %c4_i32_60 = arith.constant 4 : i32
    %167 = vector.broadcast %c4_i32_60 : i32 to vector<8x128xi32>
    %168 = arith.andi %2, %167 : vector<8x128xi32>
    %c0_i32_61 = arith.constant 0 : i32
    %169 = vector.broadcast %c0_i32_61 : i32 to vector<8x128xi32>
    %170 = arith.cmpi eq, %168, %169 : vector<8x128xi32>
    %c124_i32_62 = arith.constant 124 : i32
    %171 = tpu.dynamic_rotate %166 by %c124_i32_62 dim 1 : vector<8x128xf32>, i32 -> vector<8x128xf32>
    %c4_i32_63 = arith.constant 4 : i32
    %172 = tpu.dynamic_rotate %166 by %c4_i32_63 dim 1 : vector<8x128xf32>, i32 -> vector<8x128xf32>
    %173 = arith.select %170, %171, %172 : vector<8x128xi1>, vector<8x128xf32>
    %cst_64 = arith.constant dense<true> : vector<8x128xi1>
    %174 = arith.xori %170, %cst_64 : vector<8x128xi1>
    %175 = arith.xori %142, %174 : vector<8x128xi1>
    %176 = arith.maximumf %166, %173 : vector<8x128xf32>
    %177 = arith.minimumf %166, %173 : vector<8x128xf32>
    %178 = arith.select %175, %176, %177 : vector<8x128xi1>, vector<8x128xf32>
    %c2_i32_65 = arith.constant 2 : i32
    %179 = vector.broadcast %c2_i32_65 : i32 to vector<8x128xi32>
    %180 = arith.andi %2, %179 : vector<8x128xi32>
    %c0_i32_66 = arith.constant 0 : i32
    %181 = vector.broadcast %c0_i32_66 : i32 to vector<8x128xi32>
    %182 = arith.cmpi eq, %180, %181 : vector<8x128xi32>
    %c126_i32_67 = arith.constant 126 : i32
    %183 = tpu.dynamic_rotate %178 by %c126_i32_67 dim 1 : vector<8x128xf32>, i32 -> vector<8x128xf32>
    %c2_i32_68 = arith.constant 2 : i32
    %184 = tpu.dynamic_rotate %178 by %c2_i32_68 dim 1 : vector<8x128xf32>, i32 -> vector<8x128xf32>
    %185 = arith.select %182, %183, %184 : vector<8x128xi1>, vector<8x128xf32>
    %cst_69 = arith.constant dense<true> : vector<8x128xi1>
    %186 = arith.xori %182, %cst_69 : vector<8x128xi1>
    %187 = arith.xori %142, %186 : vector<8x128xi1>
    %188 = arith.maximumf %178, %185 : vector<8x128xf32>
    %189 = arith.minimumf %178, %185 : vector<8x128xf32>
    %190 = arith.select %187, %188, %189 : vector<8x128xi1>, vector<8x128xf32>
    %c1_i32_70 = arith.constant 1 : i32
    %191 = vector.broadcast %c1_i32_70 : i32 to vector<8x128xi32>
    %192 = arith.andi %2, %191 : vector<8x128xi32>
    %c0_i32_71 = arith.constant 0 : i32
    %193 = vector.broadcast %c0_i32_71 : i32 to vector<8x128xi32>
    %194 = arith.cmpi eq, %192, %193 : vector<8x128xi32>
    %c127_i32_72 = arith.constant 127 : i32
    %195 = tpu.dynamic_rotate %190 by %c127_i32_72 dim 1 : vector<8x128xf32>, i32 -> vector<8x128xf32>
    %c1_i32_73 = arith.constant 1 : i32
    %196 = tpu.dynamic_rotate %190 by %c1_i32_73 dim 1 : vector<8x128xf32>, i32 -> vector<8x128xf32>
    %197 = arith.select %194, %195, %196 : vector<8x128xi1>, vector<8x128xf32>
    %cst_74 = arith.constant dense<true> : vector<8x128xi1>
    %198 = arith.xori %194, %cst_74 : vector<8x128xi1>
    %199 = arith.xori %142, %198 : vector<8x128xi1>
    %200 = arith.maximumf %190, %197 : vector<8x128xf32>
    %201 = arith.minimumf %190, %197 : vector<8x128xf32>
    %202 = arith.select %199, %200, %201 : vector<8x128xi1>, vector<8x128xf32>
    %c64_i32 = arith.constant 64 : i32
    %203 = vector.broadcast %c64_i32 : i32 to vector<8x128xi32>
    %204 = arith.andi %2, %203 : vector<8x128xi32>
    %c0_i32_75 = arith.constant 0 : i32
    %205 = vector.broadcast %c0_i32_75 : i32 to vector<8x128xi32>
    %206 = arith.cmpi ne, %204, %205 : vector<8x128xi32>
    %c32_i32_76 = arith.constant 32 : i32
    %207 = vector.broadcast %c32_i32_76 : i32 to vector<8x128xi32>
    %208 = arith.andi %2, %207 : vector<8x128xi32>
    %c0_i32_77 = arith.constant 0 : i32
    %209 = vector.broadcast %c0_i32_77 : i32 to vector<8x128xi32>
    %210 = arith.cmpi eq, %208, %209 : vector<8x128xi32>
    %c96_i32 = arith.constant 96 : i32
    %211 = tpu.dynamic_rotate %202 by %c96_i32 dim 1 : vector<8x128xf32>, i32 -> vector<8x128xf32>
    %c32_i32_78 = arith.constant 32 : i32
    %212 = tpu.dynamic_rotate %202 by %c32_i32_78 dim 1 : vector<8x128xf32>, i32 -> vector<8x128xf32>
    %213 = arith.select %210, %211, %212 : vector<8x128xi1>, vector<8x128xf32>
    %cst_79 = arith.constant dense<true> : vector<8x128xi1>
    %214 = arith.xori %210, %cst_79 : vector<8x128xi1>
    %215 = arith.xori %206, %214 : vector<8x128xi1>
    %216 = arith.maximumf %202, %213 : vector<8x128xf32>
    %217 = arith.minimumf %202, %213 : vector<8x128xf32>
    %218 = arith.select %215, %216, %217 : vector<8x128xi1>, vector<8x128xf32>
    %c16_i32_80 = arith.constant 16 : i32
    %219 = vector.broadcast %c16_i32_80 : i32 to vector<8x128xi32>
    %220 = arith.andi %2, %219 : vector<8x128xi32>
    %c0_i32_81 = arith.constant 0 : i32
    %221 = vector.broadcast %c0_i32_81 : i32 to vector<8x128xi32>
    %222 = arith.cmpi eq, %220, %221 : vector<8x128xi32>
    %c112_i32_82 = arith.constant 112 : i32
    %223 = tpu.dynamic_rotate %218 by %c112_i32_82 dim 1 : vector<8x128xf32>, i32 -> vector<8x128xf32>
    %c16_i32_83 = arith.constant 16 : i32
    %224 = tpu.dynamic_rotate %218 by %c16_i32_83 dim 1 : vector<8x128xf32>, i32 -> vector<8x128xf32>
    %225 = arith.select %222, %223, %224 : vector<8x128xi1>, vector<8x128xf32>
    %cst_84 = arith.constant dense<true> : vector<8x128xi1>
    %226 = arith.xori %222, %cst_84 : vector<8x128xi1>
    %227 = arith.xori %206, %226 : vector<8x128xi1>
    %228 = arith.maximumf %218, %225 : vector<8x128xf32>
    %229 = arith.minimumf %218, %225 : vector<8x128xf32>
    %230 = arith.select %227, %228, %229 : vector<8x128xi1>, vector<8x128xf32>
    %c8_i32_85 = arith.constant 8 : i32
    %231 = vector.broadcast %c8_i32_85 : i32 to vector<8x128xi32>
    %232 = arith.andi %2, %231 : vector<8x128xi32>
    %c0_i32_86 = arith.constant 0 : i32
    %233 = vector.broadcast %c0_i32_86 : i32 to vector<8x128xi32>
    %234 = arith.cmpi eq, %232, %233 : vector<8x128xi32>
    %c120_i32_87 = arith.constant 120 : i32
    %235 = tpu.dynamic_rotate %230 by %c120_i32_87 dim 1 : vector<8x128xf32>, i32 -> vector<8x128xf32>
    %c8_i32_88 = arith.constant 8 : i32
    %236 = tpu.dynamic_rotate %230 by %c8_i32_88 dim 1 : vector<8x128xf32>, i32 -> vector<8x128xf32>
    %237 = arith.select %234, %235, %236 : vector<8x128xi1>, vector<8x128xf32>
    %cst_89 = arith.constant dense<true> : vector<8x128xi1>
    %238 = arith.xori %234, %cst_89 : vector<8x128xi1>
    %239 = arith.xori %206, %238 : vector<8x128xi1>
    %240 = arith.maximumf %230, %237 : vector<8x128xf32>
    %241 = arith.minimumf %230, %237 : vector<8x128xf32>
    %242 = arith.select %239, %240, %241 : vector<8x128xi1>, vector<8x128xf32>
    %c4_i32_90 = arith.constant 4 : i32
    %243 = vector.broadcast %c4_i32_90 : i32 to vector<8x128xi32>
    %244 = arith.andi %2, %243 : vector<8x128xi32>
    %c0_i32_91 = arith.constant 0 : i32
    %245 = vector.broadcast %c0_i32_91 : i32 to vector<8x128xi32>
    %246 = arith.cmpi eq, %244, %245 : vector<8x128xi32>
    %c124_i32_92 = arith.constant 124 : i32
    %247 = tpu.dynamic_rotate %242 by %c124_i32_92 dim 1 : vector<8x128xf32>, i32 -> vector<8x128xf32>
    %c4_i32_93 = arith.constant 4 : i32
    %248 = tpu.dynamic_rotate %242 by %c4_i32_93 dim 1 : vector<8x128xf32>, i32 -> vector<8x128xf32>
    %249 = arith.select %246, %247, %248 : vector<8x128xi1>, vector<8x128xf32>
    %cst_94 = arith.constant dense<true> : vector<8x128xi1>
    %250 = arith.xori %246, %cst_94 : vector<8x128xi1>
    %251 = arith.xori %206, %250 : vector<8x128xi1>
    %252 = arith.maximumf %242, %249 : vector<8x128xf32>
    %253 = arith.minimumf %242, %249 : vector<8x128xf32>
    %254 = arith.select %251, %252, %253 : vector<8x128xi1>, vector<8x128xf32>
    %c2_i32_95 = arith.constant 2 : i32
    %255 = vector.broadcast %c2_i32_95 : i32 to vector<8x128xi32>
    %256 = arith.andi %2, %255 : vector<8x128xi32>
    %c0_i32_96 = arith.constant 0 : i32
    %257 = vector.broadcast %c0_i32_96 : i32 to vector<8x128xi32>
    %258 = arith.cmpi eq, %256, %257 : vector<8x128xi32>
    %c126_i32_97 = arith.constant 126 : i32
    %259 = tpu.dynamic_rotate %254 by %c126_i32_97 dim 1 : vector<8x128xf32>, i32 -> vector<8x128xf32>
    %c2_i32_98 = arith.constant 2 : i32
    %260 = tpu.dynamic_rotate %254 by %c2_i32_98 dim 1 : vector<8x128xf32>, i32 -> vector<8x128xf32>
    %261 = arith.select %258, %259, %260 : vector<8x128xi1>, vector<8x128xf32>
    %cst_99 = arith.constant dense<true> : vector<8x128xi1>
    %262 = arith.xori %258, %cst_99 : vector<8x128xi1>
    %263 = arith.xori %206, %262 : vector<8x128xi1>
    %264 = arith.maximumf %254, %261 : vector<8x128xf32>
    %265 = arith.minimumf %254, %261 : vector<8x128xf32>
    %266 = arith.select %263, %264, %265 : vector<8x128xi1>, vector<8x128xf32>
    %c1_i32_100 = arith.constant 1 : i32
    %267 = vector.broadcast %c1_i32_100 : i32 to vector<8x128xi32>
    %268 = arith.andi %2, %267 : vector<8x128xi32>
    %c0_i32_101 = arith.constant 0 : i32
    %269 = vector.broadcast %c0_i32_101 : i32 to vector<8x128xi32>
    %270 = arith.cmpi eq, %268, %269 : vector<8x128xi32>
    %c127_i32_102 = arith.constant 127 : i32
    %271 = tpu.dynamic_rotate %266 by %c127_i32_102 dim 1 : vector<8x128xf32>, i32 -> vector<8x128xf32>
    %c1_i32_103 = arith.constant 1 : i32
    %272 = tpu.dynamic_rotate %266 by %c1_i32_103 dim 1 : vector<8x128xf32>, i32 -> vector<8x128xf32>
    %273 = arith.select %270, %271, %272 : vector<8x128xi1>, vector<8x128xf32>
    %cst_104 = arith.constant dense<true> : vector<8x128xi1>
    %274 = arith.xori %270, %cst_104 : vector<8x128xi1>
    %275 = arith.xori %206, %274 : vector<8x128xi1>
    %276 = arith.maximumf %266, %273 : vector<8x128xf32>
    %277 = arith.minimumf %266, %273 : vector<8x128xf32>
    %278 = arith.select %275, %276, %277 : vector<8x128xi1>, vector<8x128xf32>
    %c64_i32_105 = arith.constant 64 : i32
    %279 = vector.broadcast %c64_i32_105 : i32 to vector<8x128xi32>
    %280 = arith.andi %2, %279 : vector<8x128xi32>
    %c0_i32_106 = arith.constant 0 : i32
    %281 = vector.broadcast %c0_i32_106 : i32 to vector<8x128xi32>
    %282 = arith.cmpi eq, %280, %281 : vector<8x128xi32>
    %c64_i32_107 = arith.constant 64 : i32
    %283 = tpu.dynamic_rotate %278 by %c64_i32_107 dim 1 : vector<8x128xf32>, i32 -> vector<8x128xf32>
    %c64_i32_108 = arith.constant 64 : i32
    %284 = tpu.dynamic_rotate %278 by %c64_i32_108 dim 1 : vector<8x128xf32>, i32 -> vector<8x128xf32>
    %285 = arith.select %282, %283, %284 : vector<8x128xi1>, vector<8x128xf32>
    %286 = arith.maximumf %278, %285 : vector<8x128xf32>
    %287 = arith.minimumf %278, %285 : vector<8x128xf32>
    %288 = arith.select %282, %286, %287 : vector<8x128xi1>, vector<8x128xf32>
    %c32_i32_109 = arith.constant 32 : i32
    %289 = vector.broadcast %c32_i32_109 : i32 to vector<8x128xi32>
    %290 = arith.andi %2, %289 : vector<8x128xi32>
    %c0_i32_110 = arith.constant 0 : i32
    %291 = vector.broadcast %c0_i32_110 : i32 to vector<8x128xi32>
    %292 = arith.cmpi eq, %290, %291 : vector<8x128xi32>
    %c96_i32_111 = arith.constant 96 : i32
    %293 = tpu.dynamic_rotate %288 by %c96_i32_111 dim 1 : vector<8x128xf32>, i32 -> vector<8x128xf32>
    %c32_i32_112 = arith.constant 32 : i32
    %294 = tpu.dynamic_rotate %288 by %c32_i32_112 dim 1 : vector<8x128xf32>, i32 -> vector<8x128xf32>
    %295 = arith.select %292, %293, %294 : vector<8x128xi1>, vector<8x128xf32>
    %296 = arith.maximumf %288, %295 : vector<8x128xf32>
    %297 = arith.minimumf %288, %295 : vector<8x128xf32>
    %298 = arith.select %292, %296, %297 : vector<8x128xi1>, vector<8x128xf32>
    %c16_i32_113 = arith.constant 16 : i32
    %299 = vector.broadcast %c16_i32_113 : i32 to vector<8x128xi32>
    %300 = arith.andi %2, %299 : vector<8x128xi32>
    %c0_i32_114 = arith.constant 0 : i32
    %301 = vector.broadcast %c0_i32_114 : i32 to vector<8x128xi32>
    %302 = arith.cmpi eq, %300, %301 : vector<8x128xi32>
    %c112_i32_115 = arith.constant 112 : i32
    %303 = tpu.dynamic_rotate %298 by %c112_i32_115 dim 1 : vector<8x128xf32>, i32 -> vector<8x128xf32>
    %c16_i32_116 = arith.constant 16 : i32
    %304 = tpu.dynamic_rotate %298 by %c16_i32_116 dim 1 : vector<8x128xf32>, i32 -> vector<8x128xf32>
    %305 = arith.select %302, %303, %304 : vector<8x128xi1>, vector<8x128xf32>
    %306 = arith.maximumf %298, %305 : vector<8x128xf32>
    %307 = arith.minimumf %298, %305 : vector<8x128xf32>
    %308 = arith.select %302, %306, %307 : vector<8x128xi1>, vector<8x128xf32>
    %c8_i32_117 = arith.constant 8 : i32
    %309 = vector.broadcast %c8_i32_117 : i32 to vector<8x128xi32>
    %310 = arith.andi %2, %309 : vector<8x128xi32>
    %c0_i32_118 = arith.constant 0 : i32
    %311 = vector.broadcast %c0_i32_118 : i32 to vector<8x128xi32>
    %312 = arith.cmpi eq, %310, %311 : vector<8x128xi32>
    %c120_i32_119 = arith.constant 120 : i32
    %313 = tpu.dynamic_rotate %308 by %c120_i32_119 dim 1 : vector<8x128xf32>, i32 -> vector<8x128xf32>
    %c8_i32_120 = arith.constant 8 : i32
    %314 = tpu.dynamic_rotate %308 by %c8_i32_120 dim 1 : vector<8x128xf32>, i32 -> vector<8x128xf32>
    %315 = arith.select %312, %313, %314 : vector<8x128xi1>, vector<8x128xf32>
    %316 = arith.maximumf %308, %315 : vector<8x128xf32>
    %317 = arith.minimumf %308, %315 : vector<8x128xf32>
    %318 = arith.select %312, %316, %317 : vector<8x128xi1>, vector<8x128xf32>
    %c4_i32_121 = arith.constant 4 : i32
    %319 = vector.broadcast %c4_i32_121 : i32 to vector<8x128xi32>
    %320 = arith.andi %2, %319 : vector<8x128xi32>
    %c0_i32_122 = arith.constant 0 : i32
    %321 = vector.broadcast %c0_i32_122 : i32 to vector<8x128xi32>
    %322 = arith.cmpi eq, %320, %321 : vector<8x128xi32>
    %c124_i32_123 = arith.constant 124 : i32
    %323 = tpu.dynamic_rotate %318 by %c124_i32_123 dim 1 : vector<8x128xf32>, i32 -> vector<8x128xf32>
    %c4_i32_124 = arith.constant 4 : i32
    %324 = tpu.dynamic_rotate %318 by %c4_i32_124 dim 1 : vector<8x128xf32>, i32 -> vector<8x128xf32>
    %325 = arith.select %322, %323, %324 : vector<8x128xi1>, vector<8x128xf32>
    %326 = arith.maximumf %318, %325 : vector<8x128xf32>
    %327 = arith.minimumf %318, %325 : vector<8x128xf32>
    %328 = arith.select %322, %326, %327 : vector<8x128xi1>, vector<8x128xf32>
    %c2_i32_125 = arith.constant 2 : i32
    %329 = vector.broadcast %c2_i32_125 : i32 to vector<8x128xi32>
    %330 = arith.andi %2, %329 : vector<8x128xi32>
    %c0_i32_126 = arith.constant 0 : i32
    %331 = vector.broadcast %c0_i32_126 : i32 to vector<8x128xi32>
    %332 = arith.cmpi eq, %330, %331 : vector<8x128xi32>
    %c126_i32_127 = arith.constant 126 : i32
    %333 = tpu.dynamic_rotate %328 by %c126_i32_127 dim 1 : vector<8x128xf32>, i32 -> vector<8x128xf32>
    %c2_i32_128 = arith.constant 2 : i32
    %334 = tpu.dynamic_rotate %328 by %c2_i32_128 dim 1 : vector<8x128xf32>, i32 -> vector<8x128xf32>
    %335 = arith.select %332, %333, %334 : vector<8x128xi1>, vector<8x128xf32>
    %336 = arith.maximumf %328, %335 : vector<8x128xf32>
    %337 = arith.minimumf %328, %335 : vector<8x128xf32>
    %338 = arith.select %332, %336, %337 : vector<8x128xi1>, vector<8x128xf32>
    %c1_i32_129 = arith.constant 1 : i32
    %339 = vector.broadcast %c1_i32_129 : i32 to vector<8x128xi32>
    %340 = arith.andi %2, %339 : vector<8x128xi32>
    %c0_i32_130 = arith.constant 0 : i32
    %341 = vector.broadcast %c0_i32_130 : i32 to vector<8x128xi32>
    %342 = arith.cmpi eq, %340, %341 : vector<8x128xi32>
    %c127_i32_131 = arith.constant 127 : i32
    %343 = tpu.dynamic_rotate %338 by %c127_i32_131 dim 1 : vector<8x128xf32>, i32 -> vector<8x128xf32>
    %c1_i32_132 = arith.constant 1 : i32
    %344 = tpu.dynamic_rotate %338 by %c1_i32_132 dim 1 : vector<8x128xf32>, i32 -> vector<8x128xf32>
    %345 = arith.select %342, %343, %344 : vector<8x128xi1>, vector<8x128xf32>
    %346 = arith.maximumf %338, %345 : vector<8x128xf32>
    %347 = arith.minimumf %338, %345 : vector<8x128xf32>
    %348 = arith.select %342, %346, %347 : vector<8x128xi1>, vector<8x128xf32>
    %349 = vector.broadcast %1 : vector<8x1xf32> to vector<8x128xf32>
    %350 = arith.mulf %349, %348 : vector<8x128xf32>
    %cst_133 = arith.constant dense<0.000000e+00> : vector<128xf32>
    %351 = vector.multi_reduction <add>, %350, %cst_133 [0] : vector<8x128xf32> to vector<128xf32>
    %352 = vector.shape_cast %351 : vector<128xf32> to vector<1x128xf32>
    %353 = vector.shape_cast %352 : vector<1x128xf32> to vector<1x1x128xf32>
    %c0_134 = arith.constant 0 : index
    %c0_135 = arith.constant 0 : index
    %c0_136 = arith.constant 0 : index
    %354 = vector.load %arg3[%c0_134, %c0_135, %c0_136] : memref<1x1x128xf32, #tpu.memory_space<vmem>>, vector<1x1x128xf32>
    tpu.vector_store %arg3[%c0_134, %c0_135, %c0_136], %353 {strides = array<i32>} : memref<1x1x128xf32, #tpu.memory_space<vmem>>, vector<1x1x128xf32>,
    return
  }
  func.func @transform_0(%arg0: i32) -> (i32, i32) {
    %c0_i32 = arith.constant 0 : i32
    %c0_i32_0 = arith.constant 0 : i32
    return %arg0, %c0_i32 : i32, i32
  }
  func.func @transform_1(%arg0: i32) -> (i32, i32) {
    %c0_i32 = arith.constant 0 : i32
    %c0_i32_0 = arith.constant 0 : i32
    return %arg0, %c0_i32 : i32, i32
  }
  func.func @transform_2(%arg0: i32) -> (i32, i32, i32) {
    %c0_i32 = arith.constant 0 : i32
    %c0_i32_0 = arith.constant 0 : i32
    %c0_i32_1 = arith.constant 0 : i32
    return %arg0, %c0_i32, %c0_i32_0 : i32, i32, i32
  }
}

</mosaic_0001>

<llo_original>
// kernel: tpu_custom_call.1
$region0: #{tpu_custom_call.1}
  #allocation0 [shape = 'u32[]', space=smem, size = 0x4, offset = 0x4, fixed_abs, tag = 'smem constant byte address 0x4 - core index']
  #allocation1 [shape = 'u32[144,128]{1,0:T(1,128)}', space=vmem, size = 0x12000, scoped, tag = 'internal scratch']
  %s0 = inlined_call_operand.vmem [shape: f32[8,128], index: 0, kind: input, shape index: {}]
  %s1 = inlined_call_operand.vmem [shape: f32[8,1], index: 1, kind: input, shape index: {}]
  %s2 = inlined_call_operand.hbm [shape: f32[1,1,128], index: 2, kind: output, shape index: {}]
  %s3 = sld [smem:[#allocation0]]
  $region18: #{tpu_custom_call.1} parent=0
    _
  %s5 = ssub.s32 1, %s3
  %s6 = scalar_select 0, %s5, %s3
  $region1: #{tpu_custom_call.1} parent=0
    #allocation2 [shape = 'u8[512]{0}', space=vmem, size = 0x400, scoped, tag = 'output window, operand 0, single buffered']
    #allocation3 [shape = 's32[1]{0}', space=sflag, size = 0x4, scoped, tag = 'scoped memory for tpu_custom_call.1']
    %7 = vsyncpa [#allocation3], 0
    // Predicated region
    $region2: #{tpu_custom_call.1} parent=1 // pred_check
      _
    $region3: #{tpu_custom_call.1} parent=1 // pred_check_branch
      %9 = sbr.rel (0) target = $region5
    $region4: #{tpu_custom_call.1} parent=1 // pred_region
      _
    $region5: #{tpu_custom_call.1} parent=1 // pred_fallthru
      _
    // Predicated region
    $region6: #{tpu_custom_call.1} parent=1 // pred_check
      _
    $region7: #{tpu_custom_call.1} parent=1 // pred_check_branch
      %11 = sbr.rel (0) target = $region9
    $region8: #{tpu_custom_call.1} parent=1 // pred_region
      _
    $region9: #{tpu_custom_call.1} parent=1 // pred_fallthru
      _
    %v12 = vld [vmem:[%s0] sm:$0xff]
    %v13 = vld [vmem:[%s1] sm:$0xff]
    %v14 = vlaneseq
    %v15 = vand.u32 %v14, 127
    %v16 = vand.u32 %v15, 2
    %vm17 = vcmp.ne.s32.totalorder %v16, 0
    %v18 = vand.u32 %v15, 1
    %vm19 = vcmp.eq.s32.totalorder %v18, 0
    %20 = vrot.lane.b32.xlu0 %v12, 127
    %v21 = vpop.permute.xlu0 %20
    %22 = vrot.lane.b32.xlu0 %v12, 1
    %v23 = vpop.permute.xlu0 %22
    %v24 = vsel %vm19, %v21, %v23
    %vm25 = vmxor %vm19, 1
    %vm26 = vmxor %vm17, %vm25
    %v27 = vmax.f32 %v12, %v24
    %v28 = vmin.f32 %v12, %v24
    %v29 = vsel %vm26, %v27, %v28
    %v30 = vand.u32 %v15, 4
    %vm31 = vcmp.ne.s32.totalorder %v30, 0
    %vm32 = vcmp.eq.s32.totalorder %v16, 0
    %33 = vrot.lane.b32.xlu0 %v29, 126
    %v34 = vpop.permute.xlu0 %33
    %35 = vrot.lane.b32.xlu0 %v29, 2
    %v36 = vpop.permute.xlu0 %35
    %v37 = vsel %vm32, %v34, %v36
    %vm38 = vmxor %vm32, 1
    %vm39 = vmxor %vm31, %vm38
    %v40 = vmax.f32 %v29, %v37
    %v41 = vmin.f32 %v29, %v37
    %v42 = vsel %vm39, %v40, %v41
    %43 = vrot.lane.b32.xlu0 %v42, 127
    %v44 = vpop.permute.xlu0 %43
    %45 = vrot.lane.b32.xlu0 %v42, 1
    %v46 = vpop.permute.xlu0 %45
    %v47 = vsel %vm19, %v44, %v46
    %vm48 = vmxor %vm31, %vm25
    %v49 = vmax.f32 %v42, %v47
    %v50 = vmin.f32 %v42, %v47
    %v51 = vsel %vm48, %v49, %v50
    %v52 = vand.u32 %v15, 8
    %vm53 = vcmp.ne.s32.totalorder %v52, 0
    %vm54 = vcmp.eq.s32.totalorder %v30, 0
    %55 = vrot.lane.b32.xlu0 %v51, 124
    %v56 = vpop.permute.xlu0 %55
    %57 = vrot.lane.b32.xlu0 %v51, 4
    %v58 = vpop.permute.xlu0 %57
    %v59 = vsel %vm54, %v56, %v58
    %vm60 = vmxor %vm54, 1
    %vm61 = vmxor %vm53, %vm60
    %v62 = vmax.f32 %v51, %v59
    %v63 = vmin.f32 %v51, %v59
    %v64 = vsel %vm61, %v62, %v63
    %65 = vrot.lane.b32.xlu0 %v64, 126
    %v66 = vpop.permute.xlu0 %65
    %67 = vrot.lane.b32.xlu0 %v64, 2
    %v68 = vpop.permute.xlu0 %67
    %v69 = vsel %vm32, %v66, %v68
    %vm70 = vmxor %vm53, %vm38
    %v71 = vmax.f32 %v64, %v69
    %v72 = vmin.f32 %v64, %v69
    %v73 = vsel %vm70, %v71, %v72
    %74 = vrot.lane.b32.xlu0 %v73, 127
    %v75 = vpop.permute.xlu0 %74
    %76 = vrot.lane.b32.xlu0 %v73, 1
    %v77 = vpop.permute.xlu0 %76
    %v78 = vsel %vm19, %v75, %v77
    %vm79 = vmxor %vm53, %vm25
    %v80 = vmax.f32 %v73, %v78
    %v81 = vmin.f32 %v73, %v78
    %v82 = vsel %vm79, %v80, %v81
    %v83 = vand.u32 %v15, 16
    %vm84 = vcmp.ne.s32.totalorder %v83, 0
    %vm85 = vcmp.eq.s32.totalorder %v52, 0
    %86 = vrot.lane.b32.xlu0 %v82, 120
    %v87 = vpop.permute.xlu0 %86
    %88 = vrot.lane.b32.xlu0 %v82, 8
    %v89 = vpop.permute.xlu0 %88
    %v90 = vsel %vm85, %v87, %v89
    %vm91 = vmxor %vm85, 1
    %vm92 = vmxor %vm84, %vm91
    %v93 = vmax.f32 %v82, %v90
    %v94 = vmin.f32 %v82, %v90
    %v95 = vsel %vm92, %v93, %v94
    %96 = vrot.lane.b32.xlu0 %v95, 124
    %v97 = vpop.permute.xlu0 %96
    %98 = vrot.lane.b32.xlu0 %v95, 4
    %v99 = vpop.permute.xlu0 %98
    %v100 = vsel %vm54, %v97, %v99
    %vm101 = vmxor %vm84, %vm60
    %v102 = vmax.f32 %v95, %v100
    %v103 = vmin.f32 %v95, %v100
    %v104 = vsel %vm101, %v102, %v103
    %105 = vrot.lane.b32.xlu0 %v104, 126
    %v106 = vpop.permute.xlu0 %105
    %107 = vrot.lane.b32.xlu0 %v104, 2
    %v108 = vpop.permute.xlu0 %107
    %v109 = vsel %vm32, %v106, %v108
    %vm110 = vmxor %vm84, %vm38
    %v111 = vmax.f32 %v104, %v109
    %v112 = vmin.f32 %v104, %v109
    %v113 = vsel %vm110, %v111, %v112
    %114 = vrot.lane.b32.xlu0 %v113, 127
    %v115 = vpop.permute.xlu0 %114
    %116 = vrot.lane.b32.xlu0 %v113, 1
    %v117 = vpop.permute.xlu0 %116
    %v118 = vsel %vm19, %v115, %v117
    %vm119 = vmxor %vm84, %vm25
    %v120 = vmax.f32 %v113, %v118
    %v121 = vmin.f32 %v113, %v118
    %v122 = vsel %vm119, %v120, %v121
    %v123 = vand.u32 %v15, 32
    %vm124 = vcmp.ne.s32.totalorder %v123, 0
    %vm125 = vcmp.eq.s32.totalorder %v83, 0
    %126 = vrot.lane.b32.xlu0 %v122, 112
    %v127 = vpop.permute.xlu0 %126
    %128 = vrot.lane.b32.xlu0 %v122, 16
    %v129 = vpop.permute.xlu0 %128
    %v130 = vsel %vm125, %v127, %v129
    %vm131 = vmxor %vm125, 1
    %vm132 = vmxor %vm124, %vm131
    %v133 = vmax.f32 %v122, %v130
    %v134 = vmin.f32 %v122, %v130
    %v135 = vsel %vm132, %v133, %v134
    %136 = vrot.lane.b32.xlu0 %v135, 120
    %v137 = vpop.permute.xlu0 %136
    %138 = vrot.lane.b32.xlu0 %v135, 8
    %v139 = vpop.permute.xlu0 %138
    %v140 = vsel %vm85, %v137, %v139
    %vm141 = vmxor %vm124, %vm91
    %v142 = vmax.f32 %v135, %v140
    %v143 = vmin.f32 %v135, %v140
    %v144 = vsel %vm141, %v142, %v143
    %145 = vrot.lane.b32.xlu0 %v144, 124
    %v146 = vpop.permute.xlu0 %145
    %147 = vrot.lane.b32.xlu0 %v144, 4
    %v148 = vpop.permute.xlu0 %147
    %v149 = vsel %vm54, %v146, %v148
    %vm150 = vmxor %vm124, %vm60
    %v151 = vmax.f32 %v144, %v149
    %v152 = vmin.f32 %v144, %v149
    %v153 = vsel %vm150, %v151, %v152
    %154 = vrot.lane.b32.xlu0 %v153, 126
    %v155 = vpop.permute.xlu0 %154
    %156 = vrot.lane.b32.xlu0 %v153, 2
    %v157 = vpop.permute.xlu0 %156
    %v158 = vsel %vm32, %v155, %v157
    %vm159 = vmxor %vm124, %vm38
    %v160 = vmax.f32 %v153, %v158
    %v161 = vmin.f32 %v153, %v158
    %v162 = vsel %vm159, %v160, %v161
    %163 = vrot.lane.b32.xlu0 %v162, 127
    %v164 = vpop.permute.xlu0 %163
    %165 = vrot.lane.b32.xlu0 %v162, 1
    %v166 = vpop.permute.xlu0 %165
    %v167 = vsel %vm19, %v164, %v166
    %vm168 = vmxor %vm124, %vm25
    %v169 = vmax.f32 %v162, %v167
    %v170 = vmin.f32 %v162, %v167
    %v171 = vsel %vm168, %v169, %v170
    %v172 = vand.u32 %v15, 64
    %vm173 = vcmp.ne.s32.totalorder %v172, 0
    %vm174 = vcmp.eq.s32.totalorder %v123, 0
    %175 = vrot.lane.b32.xlu0 %v171, 96
    %v176 = vpop.permute.xlu0 %175
    %177 = vrot.lane.b32.xlu0 %v171, 32
    %v178 = vpop.permute.xlu0 %177
    %v179 = vsel %vm174, %v176, %v178
    %vm180 = vmxor %vm174, 1
    %vm181 = vmxor %vm173, %vm180
    %v182 = vmax.f32 %v171, %v179
    %v183 = vmin.f32 %v171, %v179
    %v184 = vsel %vm181, %v182, %v183
    %185 = vrot.lane.b32.xlu0 %v184, 112
    %v186 = vpop.permute.xlu0 %185
    %187 = vrot.lane.b32.xlu0 %v184, 16
    %v188 = vpop.permute.xlu0 %187
    %v189 = vsel %vm125, %v186, %v188
    %vm190 = vmxor %vm173, %vm131
    %v191 = vmax.f32 %v184, %v189
    %v192 = vmin.f32 %v184, %v189
    %v193 = vsel %vm190, %v191, %v192
    %194 = vrot.lane.b32.xlu0 %v193, 120
    %v195 = vpop.permute.xlu0 %194
    %196 = vrot.lane.b32.xlu0 %v193, 8
    %v197 = vpop.permute.xlu0 %196
    %v198 = vsel %vm85, %v195, %v197
    %vm199 = vmxor %vm173, %vm91
    %v200 = vmax.f32 %v193, %v198
    %v201 = vmin.f32 %v193, %v198
    %v202 = vsel %vm199, %v200, %v201
    %203 = vrot.lane.b32.xlu0 %v202, 124
    %v204 = vpop.permute.xlu0 %203
    %205 = vrot.lane.b32.xlu0 %v202, 4
    %v206 = vpop.permute.xlu0 %205
    %v207 = vsel %vm54, %v204, %v206
    %vm208 = vmxor %vm173, %vm60
    %v209 = vmax.f32 %v202, %v207
    %v210 = vmin.f32 %v202, %v207
    %v211 = vsel %vm208, %v209, %v210
    %212 = vrot.lane.b32.xlu0 %v211, 126
    %v213 = vpop.permute.xlu0 %212
    %214 = vrot.lane.b32.xlu0 %v211, 2
    %v215 = vpop.permute.xlu0 %214
    %v216 = vsel %vm32, %v213, %v215
    %vm217 = vmxor %vm173, %vm38
    %v218 = vmax.f32 %v211, %v216
    %v219 = vmin.f32 %v211, %v216
    %v220 = vsel %vm217, %v218, %v219
    %221 = vrot.lane.b32.xlu0 %v220, 127
    %v222 = vpop.permute.xlu0 %221
    %223 = vrot.lane.b32.xlu0 %v220, 1
    %v224 = vpop.permute.xlu0 %223
    %v225 = vsel %vm19, %v222, %v224
    %vm226 = vmxor %vm173, %vm25
    %v227 = vmax.f32 %v220, %v225
    %v228 = vmin.f32 %v220, %v225
    %v229 = vsel %vm226, %v227, %v228
    %vm230 = vcmp.eq.s32.totalorder %v172, 0
    %231 = vrot.lane.b32.xlu0 %v229, 64
    %v232 = vpop.permute.xlu0 %231
    %v233 = vmax.f32 %v229, %v232
    %v234 = vmin.f32 %v229, %v232
    %v235 = vsel %vm230, %v233, %v234
    %236 = vrot.lane.b32.xlu0 %v235, 96
    %v237 = vpop.permute.xlu0 %236
    %238 = vrot.lane.b32.xlu0 %v235, 32
    %v239 = vpop.permute.xlu0 %238
    %v240 = vsel %vm174, %v237, %v239
    %v241 = vmax.f32 %v235, %v240
    %v242 = vmin.f32 %v235, %v240
    %v243 = vsel %vm174, %v241, %v242
    %244 = vrot.lane.b32.xlu0 %v243, 112
    %v245 = vpop.permute.xlu0 %244
    %246 = vrot.lane.b32.xlu0 %v243, 16
    %v247 = vpop.permute.xlu0 %246
    %v248 = vsel %vm125, %v245, %v247
    %v249 = vmax.f32 %v243, %v248
    %v250 = vmin.f32 %v243, %v248
    %v251 = vsel %vm125, %v249, %v250
    %252 = vrot.lane.b32.xlu0 %v251, 120
    %v253 = vpop.permute.xlu0 %252
    %254 = vrot.lane.b32.xlu0 %v251, 8
    %v255 = vpop.permute.xlu0 %254
    %v256 = vsel %vm85, %v253, %v255
    %v257 = vmax.f32 %v251, %v256
    %v258 = vmin.f32 %v251, %v256
    %v259 = vsel %vm85, %v257, %v258
    %260 = vrot.lane.b32.xlu0 %v259, 124
    %v261 = vpop.permute.xlu0 %260
    %262 = vrot.lane.b32.xlu0 %v259, 4
    %v263 = vpop.permute.xlu0 %262
    %v264 = vsel %vm54, %v261, %v263
    %v265 = vmax.f32 %v259, %v264
    %v266 = vmin.f32 %v259, %v264
    %v267 = vsel %vm54, %v265, %v266
    %268 = vrot.lane.b32.xlu0 %v267, 126
    %v269 = vpop.permute.xlu0 %268
    %270 = vrot.lane.b32.xlu0 %v267, 2
    %v271 = vpop.permute.xlu0 %270
    %v272 = vsel %vm32, %v269, %v271
    %v273 = vmax.f32 %v267, %v272
    %v274 = vmin.f32 %v267, %v272
    %v275 = vsel %vm32, %v273, %v274
    %276 = vrot.lane.b32.xlu0 %v275, 127
    %v277 = vpop.permute.xlu0 %276
    %278 = vrot.lane.b32.xlu0 %v275, 1
    %v279 = vpop.permute.xlu0 %278
    %v280 = vsel %vm19, %v277, %v279
    %v281 = vmax.f32 %v275, %v280
    %v282 = vmin.f32 %v275, %v280
    %v283 = vsel %vm19, %v281, %v282
    %285 = vset.pattern.permute.xlu0 0
    %286 = vperm.xlu0 %285, %v13
    %v287 = vpop.permute.xlu0 %286
    %v289 = vmul.f32 %v287, %v283
    %v290 = vrot.slane %v289, 4
    %v291 = vadd.f32 %v289, %v290
    %v292 = vrot.slane %v291, 2
    %v293 = vadd.f32 %v291, %v292
    %v294 = vrot.slane %v293, 1
    %v295 = vadd.f32 %v293, %v294
    %296 = vst [vmem:[#allocation2] sm:$0x1] %v295
    // Predicated region
    $region10: #{tpu_custom_call.1} parent=1 // pred_check
      _
    $region11: #{tpu_custom_call.1} parent=1 // pred_check_branch
      %298 = sbr.rel (0) target = $region13
    $region12: #{tpu_custom_call.1} parent=1 // pred_region
      %s300 = ssub.s32 16, 16
      %301 = vsyncadd [#allocation3], %s300
      %s303 = sshll.u32 [#allocation2], 4
      %s304 = int_to_ptr.vmem [resolvable:$true] %s303
      %306 = dma.vmem_to_hbm [thread:$0]  %s304, 16, %s2, [#allocation3]
    $region13: #{tpu_custom_call.1} parent=1 // pred_fallthru
      _
    // Predicated region
    $region14: #{tpu_custom_call.1} parent=1 // pred_check
      _
    $region15: #{tpu_custom_call.1} parent=1 // pred_check_branch
      %308 = sbr.rel (0) target = $region17
    $region16: #{tpu_custom_call.1} parent=1 // pred_region
      %309 = dma.done [#allocation3], 16
    $region17: #{tpu_custom_call.1} parent=1 // pred_fallthru
      _
    %310 = vsyncpa [#allocation3], 1

</llo_original>
